<compile_context>
chip_gen: v5e
topology: v5e:2x2
jax: 0.10.0
libtpu: 0.0.40
codegen_flags: <defaults>
</compile_context>

<pallas_src>
import functools

import jax
import jax.numpy as jnp
from jax.experimental import pallas as pl
from jax.experimental.pallas import tpu as pltpu


def _round_up(x, m):
    return ((x + m - 1) // m) * m


def _dual_embedding_kernel(x1_ref, x2_ref, w1_ref, w2_ref, b_ref, out_ref,
                           sum1_ref, sum2_ref, *, inv_hw, hw, thw, need_hw_mask):
    # x*_ref  : (TN, C, THW)  input dtype (f32) -- one spatial tile of one batch tile
    # w*_ref  : (C, OUT)      branch weights padded block-diagonally into output cols
    # b_ref   : (1, OUT)      concatenated bias (zero in the lane-padding columns)
    # out_ref : (TN, OUT)     f32 lane-dense padded output
    # sum*_ref: (TN, C)       f32 scratch, running spatial sums per branch
    k = pl.program_id(1)

    @pl.when(k == 0)
    def _init():
        sum1_ref[...] = jnp.zeros_like(sum1_ref)
        sum2_ref[...] = jnp.zeros_like(sum2_ref)

    x1 = x1_ref[...].astype(jnp.float32)
    x2 = x2_ref[...].astype(jnp.float32)
    if need_hw_mask:
        # Last spatial tile may run past HW; zero the padded (garbage) lanes.
        lane = jax.lax.broadcasted_iota(jnp.int32, x1.shape, 2)
        valid = (k * thw + lane) < hw
        x1 = jnp.where(valid, x1, 0.0)
        x2 = jnp.where(valid, x2, 0.0)

    # Partial spatial sums, accumulated in float32.
    sum1_ref[...] += jnp.sum(x1, axis=-1)
    sum2_ref[...] += jnp.sum(x2, axis=-1)

    @pl.when(k == pl.num_programs(1) - 1)
    def _finalize():
        # Global average pool: single scale by 1/HW at finalize time.
        p1 = sum1_ref[...] * inv_hw                      # (TN, C)
        p2 = sum2_ref[...] * inv_hw                      # (TN, C)
        # Block-diagonal projection: branch 1 fills cols [0,D), branch 2 fills
        # cols [D,2D); their sum IS the channel-dim concat -> no concatenate op,
        # one full-width lane-dense store.
        out = (jnp.dot(p1, w1_ref[...].astype(jnp.float32),
                       preferred_element_type=jnp.float32)
               + jnp.dot(p2, w2_ref[...].astype(jnp.float32),
                         preferred_element_type=jnp.float32)
               + b_ref[...])
        out_ref[...] = out.astype(out_ref.dtype)


def _vmem_limit_bytes():
    """Generation-aware scoped-VMEM target (v5e/v6e 128 MiB, v7x 64 MiB per core)."""
    cap = 64 * 1024 * 1024  # conservative fallback = v7x per-TensorCore VMEM
    try:
        info = pltpu.get_tpu_info()
        cap = int(getattr(info, "vmem_capacity_bytes", cap)) or cap
    except Exception:
        pass
    return min((cap * 3) // 4, 100 * 1024 * 1024)


def _choose_tiles(N, C, HW, OUT, in_itemsize, w_itemsize, vmem_limit, max_hw_tile):
    """Pick (TN, THW) so {2 inputs x 2 pipeline buffers x tile} + resident weights,
    bias, output and scratch fit comfortably under vmem_limit, while keeping tiles
    lane-dense and the batch ('parallel') axis split into >=2 steps when N allows
    (v7x megacore)."""
    C_sub = _round_up(C, 8)
    if N < 8:
        TN = N                                             # full extent (always legal)
    elif N < 16:
        TN = 8
    else:
        TN = min(128, max(8, ((N // 2) // 8) * 8))         # >=2 batch grid steps

    while True:
        fixed = (2 * 2 * C_sub * OUT * w_itemsize          # w1p, w2p (double-buffered)
                 + 2 * 8 * OUT * 4                         # bias
                 + 2 * _round_up(TN, 8) * OUT * 4          # output block
                 + 2 * _round_up(TN, 8) * _round_up(C, 128) * 4)   # sum scratch
        act_budget = (vmem_limit * 85) // 100 - fixed
        per_tile = max(act_budget // 4, 0)                 # 2 inputs x 2 buffers
        max_lanes = per_tile // max(TN * C_sub * in_itemsize, 1)
        if max_lanes >= 128 or TN <= 8 or TN >= N:
            break
        TN = max(8, ((TN // 2) // 8) * 8)                  # shrink batch tile, retry

    max_lanes = max(int(max_lanes), 128)
    if max_hw_tile is not None:
        max_lanes = min(max_lanes, int(max_hw_tile))

    if max_lanes >= HW:
        THW = HW                                           # single spatial step
    else:
        THW = max(128, (max_lanes // 128) * 128)           # lane-dense spatial tile
    return TN, THW


def dual_embedding_net(x1, x2, w1, b1, w2, b2, *,
                       weight_dtype=jnp.float32,
                       max_hw_tile=None):
    """x1, x2: (N, C, H, W) NCHW. Returns (N, 2*D) float32 == cat([emb1, emb2], dim=1)."""
    N, C, H, W = x1.shape
    assert x2.shape == (N, C, H, W)
    C_, D = w1.shape
    assert C_ == C and w2.shape == (C, D)
    HW = H * W

    # Lane-dense padded output width (multiple of 128); padding sliced off below.
    OUT = max(128, _round_up(2 * D, 128))

    vmem_limit = _vmem_limit_bytes()
    TN, THW = _choose_tiles(N, C, HW, OUT,
                            jnp.dtype(x1.dtype).itemsize,
                            jnp.dtype(weight_dtype).itemsize,
                            vmem_limit, max_hw_tile)
    grid = (pl.cdiv(N, TN), pl.cdiv(HW, THW))
    need_hw_mask = (THW < HW) and (HW % THW != 0)

    # Flatten spatial dims (free reshape of contiguous dims).  No dtype cast here:
    # the kernel streams the inputs straight from HBM.
    x1f = x1.reshape(N, C, HW)
    x2f = x2.reshape(N, C, HW)

    # Padded "block-diagonal" projection weights + concatenated bias.
    w1p = jnp.zeros((C, OUT), weight_dtype).at[:, :D].set(w1.astype(weight_dtype))
    w2p = jnp.zeros((C, OUT), weight_dtype).at[:, D:2 * D].set(w2.astype(weight_dtype))
    bfull = jnp.zeros((1, OUT), jnp.float32)
    bfull = bfull.at[0, :D].set(b1.astype(jnp.float32))
    bfull = bfull.at[0, D:2 * D].set(b2.astype(jnp.float32))

    kernel = functools.partial(_dual_embedding_kernel,
                               inv_hw=1.0 / HW, hw=HW, thw=THW,
                               need_hw_mask=need_hw_mask)

    out_padded = pl.pallas_call(
        kernel,
        out_shape=jax.ShapeDtypeStruct((N, OUT), jnp.float32),
        grid_spec=pltpu.PrefetchScalarGridSpec(
            num_scalar_prefetch=0,
            grid=grid,
            in_specs=[
                pl.BlockSpec((TN, C, THW), lambda i, k: (i, 0, k)),  # x1 tile
                pl.BlockSpec((TN, C, THW), lambda i, k: (i, 0, k)),  # x2 tile
                pl.BlockSpec((C, OUT), lambda i, k: (0, 0)),         # w1 (padded)
                pl.BlockSpec((C, OUT), lambda i, k: (0, 0)),         # w2 (padded)
                pl.BlockSpec((1, OUT), lambda i, k: (0, 0)),         # bias
            ],
            out_specs=pl.BlockSpec((TN, OUT), lambda i, k: (i, 0)),
            scratch_shapes=[
                pltpu.VMEM((TN, C), jnp.float32),   # running spatial sum, branch 1
                pltpu.VMEM((TN, C), jnp.float32),   # running spatial sum, branch 2
            ],
        ),
        compiler_params=pltpu.CompilerParams(
            dimension_semantics=("parallel", "arbitrary"),
            vmem_limit_bytes=vmem_limit,
        ),
    )(x1f, x2f, w1p, w2p, bfull)

    return out_padded[:, :2 * D]


def _reference(x1, x2, w1, b1, w2, b2):
    # Pure f32 JAX reference, matching the original PyTorch forward.
    p1 = jnp.mean(x1.reshape(x1.shape[0], x1.shape[1], -1), axis=-1)
    p2 = jnp.mean(x2.reshape(x2.shape[0], x2.shape[1], -1), axis=-1)
    return jnp.concatenate([p1 @ w1 + b1, p2 @ w2 + b2], axis=1)


if __name__ == "__main__":
    # Small shapes consistent with the forward: two NCHW image batches.
    N, C, H, W = 2, 4, 16, 16
    D = 32  # embedding dim per branch

    key = jax.random.PRNGKey(0)
    k1, k2, k3, k4, k5, k6, k7, k8 = jax.random.split(key, 8)

    x1 = jax.random.normal(k1, (N, C, H, W), dtype=jnp.float32)
    x2 = jax.random.normal(k2, (N, C, H, W), dtype=jnp.float32)

    # Deterministic parameter init for the two embedding heads.
    w1 = jax.random.normal(k3, (C, D), dtype=jnp.float32) * (1.0 / jnp.sqrt(C))
    b1 = jax.random.normal(k4, (D,), dtype=jnp.float32) * 0.01
    w2 = jax.random.normal(k5, (C, D), dtype=jnp.float32) * (1.0 / jnp.sqrt(C))
    b2 = jax.random.normal(k6, (D,), dtype=jnp.float32) * 0.01

    ref = _reference(x1, x2, w1, b1, w2, b2)

    # 1) Default tiling (single spatial step at these toy shapes).
    out = jax.block_until_ready(dual_embedding_net(x1, x2, w1, b1, w2, b2))
    assert out.shape == (N, 2 * D), out.shape
    assert jnp.allclose(out, ref, atol=1e-4, rtol=1e-4), "mismatch vs reference (default)"

    # 2) Force multiple spatial tiles to exercise the grid-accumulation path.
    out_t = jax.block_until_ready(
        dual_embedding_net(x1, x2, w1, b1, w2, b2, max_hw_tile=128))
    assert jnp.allclose(out_t, ref, atol=1e-4, rtol=1e-4), "mismatch vs reference (tiled HW)"

    # 3) Non-128-divisible spatial extent to exercise the masked remainder tile.
    Hr, Wr = 15, 20                       # HW = 300 -> 128-lane tiles + masked tail
    x1r = jax.random.normal(k7, (N, C, Hr, Wr), dtype=jnp.float32)
    x2r = jax.random.normal(k8, (N, C, Hr, Wr), dtype=jnp.float32)
    ref_r = _reference(x1r, x2r, w1, b1, w2, b2)
    out_r = jax.block_until_ready(
        dual_embedding_net(x1r, x2r, w1, b1, w2, b2, max_hw_tile=128))
    assert jnp.allclose(out_r, ref_r, atol=1e-4, rtol=1e-4), "mismatch vs reference (masked)"

    print("KERNEL_OK")
</pallas_src>

<mosaic_0001>
module attributes {stable_mosaic.version = 11 : i64} {
  func.func @_dual_embedding_kernel(%arg0: i32, %arg1: i32, %arg2: memref<2x4x256xf32, #tpu.memory_space<vmem>>, %arg3: memref<2x4x256xf32, #tpu.memory_space<vmem>>, %arg4: memref<4x128xf32, #tpu.memory_space<vmem>>, %arg5: memref<4x128xf32, #tpu.memory_space<vmem>>, %arg6: memref<1x128xf32, #tpu.memory_space<vmem>>, %arg7: memref<2x128xf32, #tpu.memory_space<vmem>>, %arg8: memref<2x4xf32, #tpu.memory_space<vmem>>, %arg9: memref<2x4xf32, #tpu.memory_space<vmem>>) attributes {dimension_semantics = [#tpu.dimension_semantics<parallel>, #tpu.dimension_semantics<arbitrary>], iteration_bounds = array<i64: 1, 1>, scalar_prefetch = 0 : i64, scratch_operands = 2 : i64, tpu.core_type = #tpu.core_type<tc>, window_params = [{transform_indices = @transform_0, window_bounds = array<i64: 2, 4, 256>}, {transform_indices = @transform_1, window_bounds = array<i64: 2, 4, 256>}, {pipeline_mode = #tpu.pipeline_mode<synchronous>, transform_indices = @transform_2, window_bounds = array<i64: 4, 128>}, {pipeline_mode = #tpu.pipeline_mode<synchronous>, transform_indices = @transform_3, window_bounds = array<i64: 4, 128>}, {pipeline_mode = #tpu.pipeline_mode<synchronous>, transform_indices = @transform_4, window_bounds = array<i64: 1, 128>}, {transform_indices = @transform_5, window_bounds = array<i64: 2, 128>}]} {
    %c0_i32 = arith.constant 0 : i32
    %0 = arith.cmpi eq, %arg1, %c0_i32 : i32
    %1 = arith.extui %0 : i1 to i32
    %c0_i32_0 = arith.constant 0 : i32
    %2 = arith.cmpi ne, %1, %c0_i32_0 : i32
    scf.if %2 {
      %cst_17 = arith.constant 0.000000e+00 : f32
      %16 = vector.broadcast %cst_17 : f32 to vector<2x4xf32>
      %c0_18 = arith.constant 0 : index
      %c0_19 = arith.constant 0 : index
      %17 = vector.load %arg8[%c0_18, %c0_19] : memref<2x4xf32, #tpu.memory_space<vmem>>, vector<2x4xf32>
      tpu.vector_store %arg8[%c0_18, %c0_19], %16 {strides = array<i32>} : memref<2x4xf32, #tpu.memory_space<vmem>>, vector<2x4xf32>,
      %cst_20 = arith.constant 0.000000e+00 : f32
      %18 = vector.broadcast %cst_20 : f32 to vector<2x4xf32>
      %c0_21 = arith.constant 0 : index
      %c0_22 = arith.constant 0 : index
      %19 = vector.load %arg9[%c0_21, %c0_22] : memref<2x4xf32, #tpu.memory_space<vmem>>, vector<2x4xf32>
      tpu.vector_store %arg9[%c0_21, %c0_22], %18 {strides = array<i32>} : memref<2x4xf32, #tpu.memory_space<vmem>>, vector<2x4xf32>,
    } else {
    }
    %c0 = arith.constant 0 : index
    %c0_1 = arith.constant 0 : index
    %c0_2 = arith.constant 0 : index
    %3 = vector.load %arg2[%c0, %c0_1, %c0_2] : memref<2x4x256xf32, #tpu.memory_space<vmem>>, vector<2x4x256xf32>
    %c0_3 = arith.constant 0 : index
    %c0_4 = arith.constant 0 : index
    %c0_5 = arith.constant 0 : index
    %4 = vector.load %arg3[%c0_3, %c0_4, %c0_5] : memref<2x4x256xf32, #tpu.memory_space<vmem>>, vector<2x4x256xf32>
    %c0_6 = arith.constant 0 : index
    %c0_7 = arith.constant 0 : index
    %5 = vector.load %arg8[%c0_6, %c0_7] : memref<2x4xf32, #tpu.memory_space<vmem>>, vector<2x4xf32>
    %cst = arith.constant dense<0.000000e+00> : vector<2x4xf32>
    %6 = vector.multi_reduction <add>, %3, %cst [2] : vector<2x4x256xf32> to vector<2x4xf32>
    %7 = arith.addf %5, %6 : vector<2x4xf32>
    %c0_8 = arith.constant 0 : index
    %c0_9 = arith.constant 0 : index
    %8 = vector.load %arg8[%c0_8, %c0_9] : memref<2x4xf32, #tpu.memory_space<vmem>>, vector<2x4xf32>
    tpu.vector_store %arg8[%c0_8, %c0_9], %7 {strides = array<i32>} : memref<2x4xf32, #tpu.memory_space<vmem>>, vector<2x4xf32>,
    %c0_10 = arith.constant 0 : index
    %c0_11 = arith.constant 0 : index
    %9 = vector.load %arg9[%c0_10, %c0_11] : memref<2x4xf32, #tpu.memory_space<vmem>>, vector<2x4xf32>
    %cst_12 = arith.constant dense<0.000000e+00> : vector<2x4xf32>
    %10 = vector.multi_reduction <add>, %4, %cst_12 [2] : vector<2x4x256xf32> to vector<2x4xf32>
    %11 = arith.addf %9, %10 : vector<2x4xf32>
    %c0_13 = arith.constant 0 : index
    %c0_14 = arith.constant 0 : index
    %12 = vector.load %arg9[%c0_13, %c0_14] : memref<2x4xf32, #tpu.memory_space<vmem>>, vector<2x4xf32>
    tpu.vector_store %arg9[%c0_13, %c0_14], %11 {strides = array<i32>} : memref<2x4xf32, #tpu.memory_space<vmem>>, vector<2x4xf32>,
    %c0_i32_15 = arith.constant 0 : i32
    %13 = arith.cmpi eq, %arg1, %c0_i32_15 : i32
    %14 = arith.extui %13 : i1 to i32
    %c0_i32_16 = arith.constant 0 : i32
    %15 = arith.cmpi ne, %14, %c0_i32_16 : i32
    scf.if %15 {
      %c0_17 = arith.constant 0 : index
      %c0_18 = arith.constant 0 : index
      %16 = vector.load %arg8[%c0_17, %c0_18] : memref<2x4xf32, #tpu.memory_space<vmem>>, vector<2x4xf32>
      %cst_19 = arith.constant 3.906250e-03 : f32
      %17 = vector.broadcast %cst_19 : f32 to vector<2x4xf32>
      %18 = arith.mulf %16, %17 : vector<2x4xf32>
      %c0_20 = arith.constant 0 : index
      %c0_21 = arith.constant 0 : index
      %19 = vector.load %arg9[%c0_20, %c0_21] : memref<2x4xf32, #tpu.memory_space<vmem>>, vector<2x4xf32>
      %cst_22 = arith.constant 3.906250e-03 : f32
      %20 = vector.broadcast %cst_22 : f32 to vector<2x4xf32>
      %21 = arith.mulf %19, %20 : vector<2x4xf32>
      %c0_23 = arith.constant 0 : index
      %c0_24 = arith.constant 0 : index
      %22 = vector.load %arg4[%c0_23, %c0_24] : memref<4x128xf32, #tpu.memory_space<vmem>>, vector<4x128xf32>
      %cst_25 = arith.constant dense<0.000000e+00> : vector<2x128xf32>
      %23 = tpu.matmul %18, %22, %cst_25 {dimension_numbers = #tpu.dot_dimension_numbers<[1], [0], [0], [1], [0, 0, 1, 1], [], []>} : vector<2x4xf32>, vector<4x128xf32>, vector<2x128xf32> -> vector<2x128xf32>
      %c0_26 = arith.constant 0 : index
      %c0_27 = arith.constant 0 : index
      %24 = vector.load %arg5[%c0_26, %c0_27] : memref<4x128xf32, #tpu.memory_space<vmem>>, vector<4x128xf32>
      %cst_28 = arith.constant dense<0.000000e+00> : vector<2x128xf32>
      %25 = tpu.matmul %21, %24, %cst_28 {dimension_numbers = #tpu.dot_dimension_numbers<[1], [0], [0], [1], [0, 0, 1, 1], [], []>} : vector<2x4xf32>, vector<4x128xf32>, vector<2x128xf32> -> vector<2x128xf32>
      %26 = arith.addf %23, %25 : vector<2x128xf32>
      %c0_29 = arith.constant 0 : index
      %c0_30 = arith.constant 0 : index
      %27 = vector.load %arg6[%c0_29, %c0_30] : memref<1x128xf32, #tpu.memory_space<vmem>>, vector<1x128xf32>
      %28 = vector.broadcast %27 : vector<1x128xf32> to vector<2x128xf32>
      %29 = arith.addf %26, %28 : vector<2x128xf32>
      %c0_31 = arith.constant 0 : index
      %c0_32 = arith.constant 0 : index
      %30 = vector.load %arg7[%c0_31, %c0_32] : memref<2x128xf32, #tpu.memory_space<vmem>>, vector<2x128xf32>
      tpu.vector_store %arg7[%c0_31, %c0_32], %29 {strides = array<i32>} : memref<2x128xf32, #tpu.memory_space<vmem>>, vector<2x128xf32>,
    } else {
    }
    return
  }
  func.func @transform_0(%arg0: i32, %arg1: i32) -> (i32, i32, i32) {
    %c0_i32 = arith.constant 0 : i32
    %c0_i32_0 = arith.constant 0 : i32
    return %arg0, %c0_i32, %arg1 : i32, i32, i32
  }
  func.func @transform_1(%arg0: i32, %arg1: i32) -> (i32, i32, i32) {
    %c0_i32 = arith.constant 0 : i32
    %c0_i32_0 = arith.constant 0 : i32
    return %arg0, %c0_i32, %arg1 : i32, i32, i32
  }
  func.func @transform_2(%arg0: i32, %arg1: i32) -> (i32, i32) {
    %c0_i32 = arith.constant 0 : i32
    %c0_i32_0 = arith.constant 0 : i32
    %c0_i32_1 = arith.constant 0 : i32
    return %c0_i32, %c0_i32_0 : i32, i32
  }
  func.func @transform_3(%arg0: i32, %arg1: i32) -> (i32, i32) {
    %c0_i32 = arith.constant 0 : i32
    %c0_i32_0 = arith.constant 0 : i32
    %c0_i32_1 = arith.constant 0 : i32
    return %c0_i32, %c0_i32_0 : i32, i32
  }
  func.func @transform_4(%arg0: i32, %arg1: i32) -> (i32, i32) {
    %c0_i32 = arith.constant 0 : i32
    %c0_i32_0 = arith.constant 0 : i32
    %c0_i32_1 = arith.constant 0 : i32
    return %c0_i32, %c0_i32_0 : i32, i32
  }
  func.func @transform_5(%arg0: i32, %arg1: i32) -> (i32, i32) {
    %c0_i32 = arith.constant 0 : i32
    %c0_i32_0 = arith.constant 0 : i32
    return %arg0, %c0_i32 : i32, i32
  }
}

</mosaic_0001>

<llo_original>
// kernel: tpu_custom_call.1
$region0: #{tpu_custom_call.1}
  #allocation0 [shape = 'u32[]', space=smem, size = 0x4, offset = 0x4, fixed_abs, tag = 'smem constant byte address 0x4 - core index']
  #allocation1 [shape = 'u32[72,128]{1,0:T(1,128)}', space=vmem, size = 0x9000, scoped, tag = 'internal scratch']
  #allocation2 [shape = 'f32[2,4]{1,0:T(2,128)}', space=vmem, size = 0x400, scoped, tag = 'scratch operand']
  #allocation3 [shape = 'f32[2,4]{1,0:T(2,128)}', space=vmem, size = 0x400, scoped, tag = 'scratch operand']
  %s0 = inlined_call_operand.hbm [shape: f32[2,4,256], index: 0, kind: input, shape index: {}]
  %s1 = inlined_call_operand.hbm [shape: f32[2,4,256], index: 1, kind: input, shape index: {}]
  %s2 = inlined_call_operand.hbm [shape: f32[4,128], index: 2, kind: input, shape index: {}]
  %s3 = inlined_call_operand.hbm [shape: f32[4,128], index: 3, kind: input, shape index: {}]
  %s4 = inlined_call_operand.vmem [shape: f32[1,128], index: 4, kind: input, shape index: {}]
  %s5 = inlined_call_operand.hbm [shape: f32[2,128], index: 5, kind: output, shape index: {}]
  %s6 = sld [smem:[#allocation0]]
  $region54: #{tpu_custom_call.1} parent=0
    _
  %s8 = ssub.s32 1, %s6
  %s9 = scalar_select 0, %s8, %s6
  $region1: #{tpu_custom_call.1} parent=0
    #allocation4 [shape = 'u8[8192]{0}', space=vmem, size = 0x2000, scoped, tag = 'input window, operand 0, single buffered']
    #allocation5 [shape = 's32[1]{0}', space=sflag, size = 0x4, scoped, tag = 'scoped memory for tpu_custom_call.1']
    #allocation6 [shape = 's32[1]{0}', space=sflag, size = 0x4, scoped, tag = 'scoped memory for tpu_custom_call.1']
    #allocation7 [shape = 'u8[8192]{0}', space=vmem, size = 0x2000, scoped, tag = 'input window, operand 1, single buffered']
    #allocation8 [shape = 's32[1]{0}', space=sflag, size = 0x4, scoped, tag = 'scoped memory for tpu_custom_call.1']
    #allocation9 [shape = 'u8[2048]{0}', space=vmem, size = 0x800, scoped, tag = 'input window, operand 2, single buffered']
    #allocation10 [shape = 'u8[2048]{0}', space=vmem, size = 0x800, scoped, tag = 'input window, operand 3, single buffered']
    #allocation11 [shape = 's32[1]{0}', space=sflag, size = 0x4, scoped, tag = 'scoped memory for tpu_custom_call.1']
    #allocation12 [shape = 'u8[1024]{0}', space=vmem, size = 0x400, scoped, tag = 'output window, operand 0, single buffered']
    %10 = vsyncpa [#allocation5], 0
    %11 = vsyncpa [#allocation8], 0
    %12 = vsyncpa [#allocation11], 0
    %13 = vsyncpa [#allocation6], 0
    // Predicated region
    $region2: #{tpu_custom_call.1} parent=1 // pred_check
      _
    $region3: #{tpu_custom_call.1} parent=1 // pred_check_branch
      %15 = sbr.rel (0) target = $region5
    $region4: #{tpu_custom_call.1} parent=1 // pred_region
      %17 = vsyncadd [#allocation5], 0
      %s18 = sshll.u32 %s0, 4
      %s19 = int_to_ptr.hbm [resolvable:$true] %s18
      %s20 = sshll.u32 [#allocation4], 4
      %s21 = int_to_ptr.vmem [resolvable:$true] %s20
      %26 = dma.hbm_to_vmem [thread:$0]  %s19, 256, %s21, [#allocation5], 128, 128, 8
    $region5: #{tpu_custom_call.1} parent=1 // pred_fallthru
      _
    // Predicated region
    $region6: #{tpu_custom_call.1} parent=1 // pred_check
      _
    $region7: #{tpu_custom_call.1} parent=1 // pred_check_branch
      %28 = sbr.rel (0) target = $region9
    $region8: #{tpu_custom_call.1} parent=1 // pred_region
      %30 = vsyncadd [#allocation8], 0
      %s31 = sshll.u32 %s1, 4
      %s32 = int_to_ptr.hbm [resolvable:$true] %s31
      %s33 = sshll.u32 [#allocation7], 4
      %s34 = int_to_ptr.vmem [resolvable:$true] %s33
      %39 = dma.hbm_to_vmem [thread:$0]  %s32, 256, %s34, [#allocation8], 128, 128, 8
    $region9: #{tpu_custom_call.1} parent=1 // pred_fallthru
      _
    // Predicated region
    $region10: #{tpu_custom_call.1} parent=1 // pred_check
      _
    $region11: #{tpu_custom_call.1} parent=1 // pred_check_branch
      %41 = sbr.rel (0) target = $region13
    $region12: #{tpu_custom_call.1} parent=1 // pred_region
      %43 = vsyncadd [#allocation8], 0
      %s45 = sshll.u32 %s2, 4
      %s46 = int_to_ptr.hbm [resolvable:$true] %s45
      %s47 = sshll.u32 [#allocation9], 4
      %s48 = int_to_ptr.vmem [resolvable:$true] %s47
      %50 = dma.hbm_to_vmem [thread:$0]  %s46, 64, %s48, [#allocation8]
    $region13: #{tpu_custom_call.1} parent=1 // pred_fallthru
      _
    // Predicated region
    $region14: #{tpu_custom_call.1} parent=1 // pred_check
      _
    $region15: #{tpu_custom_call.1} parent=1 // pred_check_branch
      %52 = sbr.rel (0) target = $region17
    $region16: #{tpu_custom_call.1} parent=1 // pred_region
      %54 = vsyncadd [#allocation11], 0
      %s56 = sshll.u32 %s3, 4
      %s57 = int_to_ptr.hbm [resolvable:$true] %s56
      %s58 = sshll.u32 [#allocation10], 4
      %s59 = int_to_ptr.vmem [resolvable:$true] %s58
      %61 = dma.hbm_to_vmem [thread:$0]  %s57, 64, %s59, [#allocation11]
    $region17: #{tpu_custom_call.1} parent=1 // pred_fallthru
      _
    // Predicated region
    $region18: #{tpu_custom_call.1} parent=1 // pred_check
      _
    $region19: #{tpu_custom_call.1} parent=1 // pred_check_branch
      %63 = sbr.rel (0) target = $region21
    $region20: #{tpu_custom_call.1} parent=1 // pred_region
      _
    $region21: #{tpu_custom_call.1} parent=1 // pred_fallthru
      _
    // Predicated region
    $region22: #{tpu_custom_call.1} parent=1 // pred_check
      _
    $region23: #{tpu_custom_call.1} parent=1 // pred_check_branch
      %65 = sbr.rel (0) target = $region25
    $region24: #{tpu_custom_call.1} parent=1 // pred_region
      %67 = dma.done [#allocation5], 256
    $region25: #{tpu_custom_call.1} parent=1 // pred_fallthru
      _
    // Predicated region
    $region26: #{tpu_custom_call.1} parent=1 // pred_check
      _
    $region27: #{tpu_custom_call.1} parent=1 // pred_check_branch
      %69 = sbr.rel (0) target = $region29
    $region28: #{tpu_custom_call.1} parent=1 // pred_region
      %71 = dma.done [#allocation8], 256
    $region29: #{tpu_custom_call.1} parent=1 // pred_fallthru
      _
    // Predicated region
    $region30: #{tpu_custom_call.1} parent=1 // pred_check
      _
    $region31: #{tpu_custom_call.1} parent=1 // pred_check_branch
      %73 = sbr.rel (0) target = $region33
    $region32: #{tpu_custom_call.1} parent=1 // pred_region
      %75 = dma.done [#allocation8], 64
    $region33: #{tpu_custom_call.1} parent=1 // pred_fallthru
      _
    // Predicated region
    $region34: #{tpu_custom_call.1} parent=1 // pred_check
      _
    $region35: #{tpu_custom_call.1} parent=1 // pred_check_branch
      %77 = sbr.rel (0) target = $region37
    $region36: #{tpu_custom_call.1} parent=1 // pred_region
      %79 = dma.done [#allocation11], 64
    $region37: #{tpu_custom_call.1} parent=1 // pred_fallthru
      _
    %p80 = scmp.eq.s32.totalorder 0, 0
    // Predicated region
    $region38: #{tpu_custom_call.1} parent=1 // pred_check
      %p81 = pneg %p80
    $region39: #{tpu_custom_call.1} parent=1 // pred_check_branch
      %83 = sbr.rel (%p81) target = $region41
    $region40: #{tpu_custom_call.1} parent=1 // pred_region
      %vm84 = vcmask 25600
      %85 = vst.msk [vmem:[#allocation2] sm:$0x3] %vm84, 0.0
      %86 = vst.msk [vmem:[#allocation3] sm:$0x3] %vm84, 0.0
    $region41: #{tpu_custom_call.1} parent=1 // pred_fallthru
      _
    %v87 = vld [vmem:[#allocation4] sm:$0xff]
    %v88 = vld [vmem:[#allocation4 + $0x8] sm:$0xff]
    %v89 = vld [vmem:[#allocation7] sm:$0xff]
    %v90 = vld [vmem:[#allocation7 + $0x8] sm:$0xff]
    %v91 = vld [vmem:[#allocation2] sm:$0x3]
    %94 = vst [vmem:[#allocation1] ss:$2 sm:$0xff] %v87
    %v95 = vld.sshfl [vmem:[#allocation1] sm:$0xff pattern:$0x75316420]
    %v96 = vld.sshfl [vmem:[#allocation1 + $0x8] sm:$0xff pattern:$0x75316420]
    %s97 = scalar_lea.vmem [#allocation1], 16
    %98 = vst [vmem:[%s97] ss:$2 sm:$0xff] %v88
    %v99 = vld.sshfl [vmem:[#allocation1 + $0x10] sm:$0xff pattern:$0x75316420]
    %v100 = vld.sshfl [vmem:[#allocation1 + $0x18] sm:$0xff pattern:$0x75316420]
    %vm105 = vcmask 1043456
    %v106 = vsel %vm105, %v95, 0.0
    %v107 = vsel %vm105, %v96, 0.0
    %v108 = vadd.f32 %v106, %v107
    %109 = vadd.xlane.f32.xlu0 %v108
    %v110 = vpop.xlane.xlu0 %109
    %v111 = vsel %vm105, %v99, 0.0
    %v112 = vsel %vm105, %v100, 0.0
    %v113 = vadd.f32 %v111, %v112
    %114 = vadd.xlane.f32.xlu0 %v113
    %v115 = vpop.xlane.xlu0 %114
    %v118 = vlaneseq
    %v119 = vand.u32 %v118, 127
    %v120 = vperm.slane %v110, %v119
    %v121 = vperm.slane %v115, %v119
    %vm122 = vcmask 1041409
    %v123 = vsel %vm122, %v121, %v120
    %v125 = vadd.f32 %v91, %v123
    %vm126 = vcmask 25600
    %127 = vst.msk [vmem:[#allocation2] sm:$0x3] %vm126, %v125
    %v128 = vld [vmem:[#allocation3] sm:$0x3]
    %131 = vst [vmem:[#allocation1] ss:$2 sm:$0xff] %v89
    %v132 = vld.sshfl [vmem:[#allocation1] sm:$0xff pattern:$0x75316420]
    %v133 = vld.sshfl [vmem:[#allocation1 + $0x8] sm:$0xff pattern:$0x75316420]
    %s134 = scalar_lea.vmem [#allocation1], 16
    %135 = vst [vmem:[%s134] ss:$2 sm:$0xff] %v90
    %v136 = vld.sshfl [vmem:[#allocation1 + $0x10] sm:$0xff pattern:$0x75316420]
    %v137 = vld.sshfl [vmem:[#allocation1 + $0x18] sm:$0xff pattern:$0x75316420]
    %v142 = vsel %vm105, %v132, 0.0
    %v143 = vsel %vm105, %v133, 0.0
    %v144 = vadd.f32 %v142, %v143
    %145 = vadd.xlane.f32.xlu0 %v144
    %v146 = vpop.xlane.xlu0 %145
    %v147 = vsel %vm105, %v136, 0.0
    %v148 = vsel %vm105, %v137, 0.0
    %v149 = vadd.f32 %v147, %v148
    %150 = vadd.xlane.f32.xlu0 %v149
    %v151 = vpop.xlane.xlu0 %150
    %v154 = vperm.slane %v146, %v119
    %v155 = vperm.slane %v151, %v119
    %v156 = vsel %vm122, %v155, %v154
    %v158 = vadd.f32 %v128, %v156
    %159 = vst.msk [vmem:[#allocation3] sm:$0x3] %vm126, %v158
    // Predicated region
    $region42: #{tpu_custom_call.1} parent=1 // pred_check
      %p160 = pneg %p80
    $region43: #{tpu_custom_call.1} parent=1 // pred_check_branch
      %162 = sbr.rel (%p160) target = $region45
    $region44: #{tpu_custom_call.1} parent=1 // pred_region
      %v163 = vld [vmem:[#allocation2] sm:$0x3]
      %v164 = vmul.f32 %v163, 0.00390625
      %v165 = vld [vmem:[#allocation3] sm:$0x3]
      %v166 = vmul.f32 %v165, 0.00390625
      %v167 = vld [vmem:[#allocation9] sm:$0xf]
      %v168 = vld [vmem:[#allocation10] sm:$0xf]
      %vm169 = vcmask 31744
      %v171 = vsel %vm169, %v166, 0
      %v174 = vsel %vm105, %v168, 0
      %176 = vmatpush.msra.mxu0 0.0
      %177 = vmatpush.msra.mxu0 0.0
      %178 = vmatpush.msra.mxu0 0.0
      %179 = vmatpush.msra.mxu0 0.0
      %180 = vmatpush.msra.mxu0 0.0
      %181 = vmatpush.msra.mxu0 0.0
      %182 = vmatpush.msra.mxu0 0.0
      %183 = vmatpush.msra.mxu0 0.0
      %184 = vmatpush.msra.mxu0 0.0
      %185 = vmatpush.msra.mxu0 0.0
      %186 = vmatpush.msra.mxu0 0.0
      %187 = vmatpush.msra.mxu0 0.0
      %188 = vmatpush.msra.mxu0 0.0
      %189 = vmatpush.msra.mxu0 0.0
      %190 = vmatpush.msra.mxu0 0.0
      %191 = vmatpush.msra.mxu0 %v174
      %192 = vmatmul.f32.gmra.mxu0 %v171
      %v193 = vpop.f32.mrf.mxu0
      %v194 = vadd.f32 0.0, %v193
      %195 = vdwg.mxu0
      %v197 = vsel %vm169, %v164, 0
      %v200 = vsel %vm105, %v167, 0
      %202 = vmatpush.msra.mxu0 0.0
      %203 = vmatpush.msra.mxu0 0.0
      %204 = vmatpush.msra.mxu0 0.0
      %205 = vmatpush.msra.mxu0 0.0
      %206 = vmatpush.msra.mxu0 0.0
      %207 = vmatpush.msra.mxu0 0.0
      %208 = vmatpush.msra.mxu0 0.0
      %209 = vmatpush.msra.mxu0 0.0
      %210 = vmatpush.msra.mxu0 0.0
      %211 = vmatpush.msra.mxu0 0.0
      %212 = vmatpush.msra.mxu0 0.0
      %213 = vmatpush.msra.mxu0 0.0
      %214 = vmatpush.msra.mxu0 0.0
      %215 = vmatpush.msra.mxu0 0.0
      %216 = vmatpush.msra.mxu0 0.0
      %217 = vmatpush.msra.mxu0 %v200
      %218 = vmatmul.f32.gmra.mxu0 %v197
      %v219 = vpop.f32.mrf.mxu0
      %v220 = vadd.f32 %v194, %v219
      %221 = vdwg.mxu0
      %v222 = vld [vmem:[%s4] sm:$0x1]
      %v224 = vperm.slane %v222, 0
      %v226 = vadd.f32 %v220, %v224
      %227 = vst [vmem:[#allocation12] sm:$0x3] %v226
    $region45: #{tpu_custom_call.1} parent=1 // pred_fallthru
      _
    // Predicated region
    $region46: #{tpu_custom_call.1} parent=1 // pred_check
      _
    $region47: #{tpu_custom_call.1} parent=1 // pred_check_branch
      %229 = sbr.rel (0) target = $region49
    $region48: #{tpu_custom_call.1} parent=1 // pred_region
      %231 = vsyncadd [#allocation6], 0
      %s233 = sshll.u32 [#allocation12], 4
      %s234 = int_to_ptr.vmem [resolvable:$true] %s233
      %s235 = sshll.u32 %s5, 4
      %s236 = int_to_ptr.hbm [resolvable:$true] %s235
      %238 = dma.vmem_to_hbm [thread:$0]  %s234, 32, %s236, [#allocation6]
    $region49: #{tpu_custom_call.1} parent=1 // pred_fallthru
      _
    // Predicated region
    $region50: #{tpu_custom_call.1} parent=1 // pred_check
      _
    $region51: #{tpu_custom_call.1} parent=1 // pred_check_branch
      %240 = sbr.rel (0) target = $region53
    $region52: #{tpu_custom_call.1} parent=1 // pred_region
      %242 = dma.done [#allocation6], 32
    $region53: #{tpu_custom_call.1} parent=1 // pred_fallthru
      _
    %243 = vsyncpa [#allocation5], 1
    %244 = vsyncpa [#allocation8], 1
    %245 = vsyncpa [#allocation11], 1
    %246 = vsyncpa [#allocation6], 1

</llo_original>
